<compile_context>
chip_gen: v7x
topology: tpu7x:2x2x1
jax: 0.10.0
libtpu: 0.0.40
codegen_flags: <defaults>
</compile_context>

<pallas_src>
import functools

import jax
import jax.numpy as jnp
import numpy as np
from jax import lax
from jax.experimental import pallas as pl
from jax.experimental.pallas import tpu as pltpu

_LANE = 128                 # TPU lane width
_SUB = 8                    # sublane quantum (f32)
_CHUNK = _SUB * _LANE       # 1024 elements == one (8,128) f32 tile


def _chip_config():
    """Return (tr_max, ncores, vmem_limit_bytes) for the local TPU generation."""
    try:
        kind = jax.devices()[0].device_kind.lower()
    except Exception:
        kind = ""
    if "v7" in kind or "7x" in kind:
        # 2 TensorCores, ~3.2 TB/s HBM: large tiles to amortize per-step
        # overhead.  8192x128 f32 double-buffered inputs ~= 24 MiB (less with
        # narrow dtypes); raise the scoped VMEM limit (64 MiB physical per TC).
        return 8192, 2, 48 << 20
    if "v6" in kind:
        return 4096, 1, None      # ~12 MiB double-buffered inputs < 32 MiB default
    # v5e and unknown chips: stay under the 16 MiB scoped VMEM default.
    return 2048, 1, None


def _focal_factor(u, gamma):
    g = float(gamma)
    if g == int(g) and 0 <= int(g) <= 8:
        out = jnp.ones_like(u)    # unrolled integer power -> pure VALU
        for _ in range(int(g)):
            out = out * u
        return out
    return jnp.power(u, g)        # generic path (non-integer gamma)


def _focal_kernel(logpt_ref, tgt_ref, mask_ref, out_ref, *, a0, a1, gamma,
                  tile_rows, tiles_per_core, total_rows):
    """One (tile_rows, 128) tile; (8,128) partial sum accumulated into out_ref.

    logpt_ref : VMEM [TR,128] log-probabilities (any float dtype)
    tgt_ref   : VMEM [TR,128] binary targets in {0, 1} (any int/bool dtype)
    mask_ref  : VMEM [TR,128] mask (any numeric/bool dtype)
    out_ref   : VMEM [1,8,128] per-core partial sums (resident accumulator)
    """
    i = pl.program_id(1)

    @pl.when(i == 0)
    def _init():
        out_ref[...] = jnp.zeros_like(out_ref)

    logpt = logpt_ref[...].astype(jnp.float32)
    pt = jnp.exp(logpt)                        # single EUP transcendental/elem
    focal = _focal_factor(1.0 - pt, gamma)

    # alpha.gather(0, target) for the 2-entry table, as one mul-add.
    at = a0 + tgt_ref[...].astype(jnp.float32) * (a1 - a0)
    loss = -focal * (logpt * at) * mask_ref[...].astype(jnp.float32)

    # Zero rows past the real extent (partial last tile and clamped/overrun
    # tiles of the per-core split read undefined VMEM).  Keep this a select,
    # not a multiply, so NaN/Inf from garbage data cannot leak.
    tile = pl.program_id(0) * tiles_per_core + i
    row_ids = tile * tile_rows + lax.broadcasted_iota(jnp.int32, loss.shape, 0)
    loss = jnp.where(row_ids < total_rows, loss, 0.0)

    # Reduce TR rows -> 8 rows with vreg-wise VPU adds; accumulate directly
    # into the resident (1,8,128) output block (no full-tile scratch traffic).
    out_ref[...] += loss.reshape(tile_rows // _SUB, _SUB, _LANE).sum(axis=0)[None]


def focal_loss(x, target, mask, *, gamma=3.0, alpha=0.75, size_average=True):
    # x is NCHW with C == 1 (required by the reference's flatten semantics);
    # target is (N, H, W) labels in {0,1}; mask matches x elementwise.
    n, c, h, w = x.shape
    assert c == 1, "reference FocalLoss flatten only consistent for C == 1"

    if isinstance(alpha, (list, tuple)):
        # TODO(synk): per-class alpha tables with >2 entries need a real gather.
        assert len(alpha) == 2
        a0, a1 = float(alpha[0]), float(alpha[1])
    else:
        a0, a1 = 1.0 - float(alpha), float(alpha)

    logpt = x.reshape(-1)
    tgt = target.reshape(-1)
    msk = mask.reshape(-1)
    n_elems = logpt.shape[0]

    # Largest prefix that is a whole number of (8,128) blocks goes through the
    # kernel (zero-copy when n_elems % 1024 == 0); the <1024-element ragged
    # tail is handled with plain jnp below.  No full-array jnp.pad.
    n_main = (n_elems // _CHUNK) * _CHUNK
    total = jnp.zeros((), jnp.float32)

    if n_main:
        if n_main == n_elems:
            lp_m, tg_m, mk_m = logpt, tgt, msk
        else:
            # NOTE: a ragged length makes this prefix slice materialize a copy;
            # still never worse than the old full-array pad, and the common
            # aligned case pays nothing.
            lp_m, tg_m, mk_m = logpt[:n_main], tgt[:n_main], msk[:n_main]

        rows = n_main // _LANE                  # multiple of 8 by construction
        lp2 = lp_m.reshape(rows, _LANE)
        tg2 = tg_m.reshape(rows, _LANE)
        mk2 = mk_m.reshape(rows, _LANE)

        tr_max, ncores_cfg, vmem_limit = _chip_config()
        # tr is a multiple of 8; when tr == tr_max (>=2048) it is also a
        # multiple of 32/16, satisfying int8/bf16 sublane quanta; when
        # tr == rows it equals the full array extent (always legal).
        tr = min(tr_max, rows)
        num_tiles = pl.cdiv(rows, tr)
        ncores = ncores_cfg if num_tiles >= 2 else 1
        tiles_per_core = pl.cdiv(num_tiles, ncores)

        kernel = functools.partial(
            _focal_kernel, a0=a0, a1=a1, gamma=float(gamma), tile_rows=tr,
            tiles_per_core=tiles_per_core, total_rows=rows)

        def in_map(cidx, i):
            t = cidx * tiles_per_core + i
            # Clamp overrun tiles (odd tile counts with 2 cores on v7x); their
            # contribution is zeroed in-kernel by the row-validity mask.
            return (jnp.minimum(t, num_tiles - 1), 0)

        bytes_in = (lp2.size * lp2.dtype.itemsize
                    + tg2.size * tg2.dtype.itemsize
                    + mk2.size * mk2.dtype.itemsize)

        partials = pl.pallas_call(
            kernel,
            out_shape=jax.ShapeDtypeStruct((ncores, _SUB, _LANE), jnp.float32),
            grid=(ncores, tiles_per_core),
            in_specs=[
                pl.BlockSpec((tr, _LANE), in_map),   # logpt (f32/bf16)
                pl.BlockSpec((tr, _LANE), in_map),   # target (int8/int32/bool)
                pl.BlockSpec((tr, _LANE), in_map),   # mask (any numeric/bool)
            ],
            out_specs=pl.BlockSpec((1, _SUB, _LANE),
                                   lambda cidx, i: (cidx, 0, 0)),
            compiler_params=pltpu.CompilerParams(
                dimension_semantics=("parallel", "arbitrary"),
                vmem_limit_bytes=vmem_limit),
            cost_estimate=pl.CostEstimate(
                flops=12 * rows * _LANE,
                transcendentals=rows * _LANE,
                bytes_accessed=bytes_in + ncores * _SUB * _LANE * 4),
        )(lp2, tg2, mk2)

        total = total + jnp.sum(partials)       # one small cross-lane reduce

    if n_main < n_elems:                        # <1024-element ragged tail
        lp_t = logpt[n_main:].astype(jnp.float32)
        at_t = a0 + tgt[n_main:].astype(jnp.float32) * (a1 - a0)
        loss_t = (-_focal_factor(1.0 - jnp.exp(lp_t), gamma)
                  * (lp_t * at_t) * msk[n_main:].astype(jnp.float32))
        total = total + jnp.sum(loss_t)

    if size_average:
        total = total / n_elems                 # matches loss.mean() (all elems)
    return total


def focal_loss_ref(x, target, mask, *, gamma=3.0, alpha=0.75,
                   size_average=True):
    """Pure-JAX reference mirroring the PyTorch forward."""
    logpt = x.reshape(-1).astype(jnp.float32)
    pt = jnp.exp(logpt)
    alpha_vec = jnp.array([1.0 - alpha, alpha], dtype=jnp.float32)
    at = alpha_vec[target.reshape(-1).astype(jnp.int32)]
    loss = -1.0 * (1.0 - pt) ** gamma * (logpt * at) * mask.reshape(-1).astype(
        jnp.float32)
    return jnp.mean(loss) if size_average else jnp.sum(loss)


if __name__ == "__main__":
    key = jax.random.PRNGKey(0)
    k1, k2, k3 = jax.random.split(key, 3)

    N, C, H, W = 2, 1, 32, 64   # 4096 elements -> 32 rows of 128, no ragged tail
    # log-probabilities (log-sigmoid of logits), as the reference expects
    x = jax.nn.log_sigmoid(jax.random.normal(k1, (N, C, H, W),
                                             dtype=jnp.float32))
    # Narrow target dtype (cast happens in-kernel; no wrapper upcast).
    target = jax.random.bernoulli(k2, 0.5, (N, H, W)).astype(jnp.int8)
    mask = (jax.random.uniform(k3, (N, C, H, W)) > 0.3).astype(jnp.float32)

    out = jax.block_until_ready(focal_loss(x, target, mask))
    ref = jax.block_until_ready(focal_loss_ref(x, target, mask))

    np.testing.assert_allclose(np.asarray(out), np.asarray(ref),
                               rtol=1e-4, atol=1e-6)
    print("KERNEL_OK")
</pallas_src>

<mosaic_0001>
module attributes {stable_mosaic.version = 11 : i64} {
  func.func @_focal_kernel(%arg0: i32, %arg1: i32, %arg2: memref<32x128xf32, #tpu.memory_space<vmem>>, %arg3: memref<32x128xi8, #tpu.memory_space<vmem>>, %arg4: memref<32x128xf32, #tpu.memory_space<vmem>>, %arg5: memref<1x8x128xf32, #tpu.memory_space<vmem>>) attributes {dimension_semantics = [#tpu.dimension_semantics<parallel>, #tpu.dimension_semantics<arbitrary>], iteration_bounds = array<i64: 1, 1>, scalar_prefetch = 0 : i64, scratch_operands = 0 : i64, tpu.core_type = #tpu.core_type<tc>, window_params = [{transform_indices = @transform_0, window_bounds = array<i64: 32, 128>}, {transform_indices = @transform_1, window_bounds = array<i64: 32, 128>}, {transform_indices = @transform_2, window_bounds = array<i64: 32, 128>}, {transform_indices = @transform_3, window_bounds = array<i64: 1, 8, 128>}]} {
    %c0_i32 = arith.constant 0 : i32
    %0 = arith.cmpi eq, %arg1, %c0_i32 : i32
    %1 = arith.extui %0 : i1 to i32
    %c0_i32_0 = arith.constant 0 : i32
    %2 = arith.cmpi ne, %1, %c0_i32_0 : i32
    scf.if %2 {
      %cst_19 = arith.constant 0.000000e+00 : f32
      %39 = vector.broadcast %cst_19 : f32 to vector<1x8x128xf32>
      %c0_20 = arith.constant 0 : index
      %c0_21 = arith.constant 0 : index
      %c0_22 = arith.constant 0 : index
      %40 = vector.load %arg5[%c0_20, %c0_21, %c0_22] : memref<1x8x128xf32, #tpu.memory_space<vmem>>, vector<1x8x128xf32>
      tpu.vector_store %arg5[%c0_20, %c0_21, %c0_22], %39 {strides = array<i32>} : memref<1x8x128xf32, #tpu.memory_space<vmem>>, vector<1x8x128xf32>,
    } else {
    }
    %c0 = arith.constant 0 : index
    %c0_1 = arith.constant 0 : index
    %3 = vector.load %arg2[%c0, %c0_1] : memref<32x128xf32, #tpu.memory_space<vmem>>, vector<32x128xf32>
    %4 = math.exp %3 : vector<32x128xf32>
    %cst = arith.constant 1.000000e+00 : f32
    %5 = vector.broadcast %cst : f32 to vector<32x128xf32>
    %6 = arith.subf %5, %4 : vector<32x128xf32>
    %cst_2 = arith.constant 1.000000e+00 : f32
    %7 = vector.broadcast %cst_2 : f32 to vector<32x128xf32>
    %8 = arith.mulf %7, %6 : vector<32x128xf32>
    %9 = arith.mulf %8, %6 : vector<32x128xf32>
    %10 = arith.mulf %9, %6 : vector<32x128xf32>
    %c0_3 = arith.constant 0 : index
    %c0_4 = arith.constant 0 : index
    %11 = vector.load %arg3[%c0_3, %c0_4] : memref<32x128xi8, #tpu.memory_space<vmem>>, vector<32x128xi8>
    %12 = arith.sitofp %11 : vector<32x128xi8> to vector<32x128xf32>
    %cst_5 = arith.constant 5.000000e-01 : f32
    %13 = vector.broadcast %cst_5 : f32 to vector<32x128xf32>
    %14 = arith.mulf %12, %13 : vector<32x128xf32>
    %cst_6 = arith.constant 2.500000e-01 : f32
    %15 = vector.broadcast %cst_6 : f32 to vector<32x128xf32>
    %16 = arith.addf %15, %14 : vector<32x128xf32>
    %cst_7 = arith.constant 0.000000e+00 : f32
    %17 = vector.broadcast %cst_7 : f32 to vector<32x128xf32>
    %18 = arith.subf %17, %10 : vector<32x128xf32>
    %19 = arith.mulf %3, %16 : vector<32x128xf32>
    %20 = arith.mulf %18, %19 : vector<32x128xf32>
    %c0_8 = arith.constant 0 : index
    %c0_9 = arith.constant 0 : index
    %21 = vector.load %arg4[%c0_8, %c0_9] : memref<32x128xf32, #tpu.memory_space<vmem>>, vector<32x128xf32>
    %22 = arith.mulf %20, %21 : vector<32x128xf32>
    %c1_i32 = arith.constant 1 : i32
    %23 = arith.muli %arg0, %c1_i32 : i32
    %24 = arith.addi %23, %arg1 : i32
    %c32_i32 = arith.constant 32 : i32
    %25 = arith.muli %24, %c32_i32 : i32
    %26 = tpu.iota {dimensions = array<i32: 0>} : vector<32x128xi32>
    %27 = vector.broadcast %25 : i32 to vector<32x128xi32>
    %28 = arith.addi %27, %26 : vector<32x128xi32>
    %c32_i32_10 = arith.constant 32 : i32
    %29 = vector.broadcast %c32_i32_10 : i32 to vector<32x128xi32>
    %30 = arith.cmpi slt, %28, %29 : vector<32x128xi32>
    %cst_11 = arith.constant 0.000000e+00 : f32
    %31 = vector.broadcast %cst_11 : f32 to vector<32x128xf32>
    %32 = arith.select %30, %22, %31 : vector<32x128xi1>, vector<32x128xf32>
    %c0_12 = arith.constant 0 : index
    %c0_13 = arith.constant 0 : index
    %c0_14 = arith.constant 0 : index
    %33 = vector.load %arg5[%c0_12, %c0_13, %c0_14] : memref<1x8x128xf32, #tpu.memory_space<vmem>>, vector<1x8x128xf32>
    %34 = vector.shape_cast %32 : vector<32x128xf32> to vector<4x8x128xf32>
    %cst_15 = arith.constant dense<0.000000e+00> : vector<8x128xf32>
    %35 = vector.multi_reduction <add>, %34, %cst_15 [0] : vector<4x8x128xf32> to vector<8x128xf32>
    %36 = vector.shape_cast %35 : vector<8x128xf32> to vector<1x8x128xf32>
    %37 = arith.addf %33, %36 : vector<1x8x128xf32>
    %c0_16 = arith.constant 0 : index
    %c0_17 = arith.constant 0 : index
    %c0_18 = arith.constant 0 : index
    %38 = vector.load %arg5[%c0_16, %c0_17, %c0_18] : memref<1x8x128xf32, #tpu.memory_space<vmem>>, vector<1x8x128xf32>
    tpu.vector_store %arg5[%c0_16, %c0_17, %c0_18], %37 {strides = array<i32>} : memref<1x8x128xf32, #tpu.memory_space<vmem>>, vector<1x8x128xf32>,
    return
  }
  func.func @transform_0(%arg0: i32, %arg1: i32) -> (i32, i32) {
    %c1_i32 = arith.constant 1 : i32
    %0 = arith.muli %arg0, %c1_i32 : i32
    %1 = arith.addi %0, %arg1 : i32
    %c0_i32 = arith.constant 0 : i32
    %2 = arith.minsi %1, %c0_i32 : i32
    %c0_i32_0 = arith.constant 0 : i32
    %c0_i32_1 = arith.constant 0 : i32
    return %2, %c0_i32_0 : i32, i32
  }
  func.func @transform_1(%arg0: i32, %arg1: i32) -> (i32, i32) {
    %c1_i32 = arith.constant 1 : i32
    %0 = arith.muli %arg0, %c1_i32 : i32
    %1 = arith.addi %0, %arg1 : i32
    %c0_i32 = arith.constant 0 : i32
    %2 = arith.minsi %1, %c0_i32 : i32
    %c0_i32_0 = arith.constant 0 : i32
    %c0_i32_1 = arith.constant 0 : i32
    return %2, %c0_i32_0 : i32, i32
  }
  func.func @transform_2(%arg0: i32, %arg1: i32) -> (i32, i32) {
    %c1_i32 = arith.constant 1 : i32
    %0 = arith.muli %arg0, %c1_i32 : i32
    %1 = arith.addi %0, %arg1 : i32
    %c0_i32 = arith.constant 0 : i32
    %2 = arith.minsi %1, %c0_i32 : i32
    %c0_i32_0 = arith.constant 0 : i32
    %c0_i32_1 = arith.constant 0 : i32
    return %2, %c0_i32_0 : i32, i32
  }
  func.func @transform_3(%arg0: i32, %arg1: i32) -> (i32, i32, i32) {
    %c0_i32 = arith.constant 0 : i32
    %c0_i32_0 = arith.constant 0 : i32
    %c0_i32_1 = arith.constant 0 : i32
    return %arg0, %c0_i32, %c0_i32_0 : i32, i32, i32
  }
}

</mosaic_0001>

<llo_original>
// kernel: tpu_custom_call.1
$region0: #{tpu_custom_call.1}
  #allocation0 [shape = 'u32[]', space=smem, size = 0x4, offset = 0x4, fixed_abs, tag = 'smem constant byte address 0x4 - core index']
  #allocation1 [shape = 'u32[144,128]{1,0:T(1,128)}', space=vmem, size = 0x12000, scoped, tag = 'internal scratch']
  %s0 = inlined_call_operand.hbm [shape: f32[32,128], index: 0, kind: input, shape index: {}]
  %s1 = inlined_call_operand.hbm [shape: s8[32,128], index: 1, kind: input, shape index: {}]
  %s2 = inlined_call_operand.hbm [shape: f32[32,128], index: 2, kind: input, shape index: {}]
  %s3 = inlined_call_operand.hbm [shape: f32[1,8,128], index: 3, kind: output, shape index: {}]
  %s4 = sld [smem:[#allocation0]]
  $region38: #{tpu_custom_call.1} parent=0
    _
  %s6 = ssub.s32 1, %s4
  %s7 = scalar_select 0, %s6, %s4
  $region1: #{tpu_custom_call.1} parent=0
    #allocation2 [shape = 'u8[16384]{0}', space=vmem, size = 0x4000, scoped, tag = 'input window, operand 0, single buffered']
    #allocation3 [shape = 's32[1]{0}', space=sflag, size = 0x4, scoped, tag = 'scoped memory for tpu_custom_call.1']
    #allocation4 [shape = 's32[1]{0}', space=sflag, size = 0x4, scoped, tag = 'scoped memory for tpu_custom_call.1']
    #allocation5 [shape = 'u8[4096]{0}', space=vmem, size = 0x1000, scoped, tag = 'input window, operand 1, single buffered']
    #allocation6 [shape = 's32[1]{0}', space=sflag, size = 0x4, scoped, tag = 'scoped memory for tpu_custom_call.1']
    #allocation7 [shape = 'u8[16384]{0}', space=vmem, size = 0x4000, scoped, tag = 'input window, operand 2, single buffered']
    #allocation8 [shape = 'u8[4096]{0}', space=vmem, size = 0x1000, scoped, tag = 'output window, operand 0, single buffered']
    %8 = vsyncpa [#allocation3], 0
    %9 = vsyncpa [#allocation6], 0
    %10 = vsyncpa [#allocation4], 0
    // Predicated region
    $region2: #{tpu_custom_call.1} parent=1 // pred_check
      _
    $region3: #{tpu_custom_call.1} parent=1 // pred_check_branch
      %12 = sbr.rel (0) target = $region5
    $region4: #{tpu_custom_call.1} parent=1 // pred_region
      %s13 = sadd.s32 0, 0
      %p14 = scmp.lt.s32.totalorder %s13, 0
      %s15 = scalar_select %p14, %s13, 0
      %s16 = smul.u32 4, %s15
      %s18 = ssub.s32 512, 512
      %19 = vsyncadd [#allocation3], %s18
      %s20 = smul.addr %s16, 128
      %s21 = scalar_lea.hbm %s0, %s20
      %s22 = sshll.u32 [#allocation2], 4
      %s23 = int_to_ptr.vmem [resolvable:$true] %s22
      %28 = dma.hbm_to_vmem [thread:$0]  %s21, 512, %s23, [#allocation3], 128, 128, 8
    $region5: #{tpu_custom_call.1} parent=1 // pred_fallthru
      _
    // Predicated region
    $region6: #{tpu_custom_call.1} parent=1 // pred_check
      _
    $region7: #{tpu_custom_call.1} parent=1 // pred_check_branch
      %30 = sbr.rel (0) target = $region9
    $region8: #{tpu_custom_call.1} parent=1 // pred_region
      %s31 = sadd.s32 0, 0
      %p32 = scmp.lt.s32.totalorder %s31, 0
      %s33 = scalar_select %p32, %s31, 0
      %s35 = ssub.s32 128, 128
      %36 = vsyncadd [#allocation6], %s35
      %s37 = smul.addr %s33, 128
      %s38 = scalar_lea.hbm %s1, %s37
      %s40 = sshll.u32 [#allocation5], 4
      %s41 = int_to_ptr.vmem [resolvable:$true] %s40
      %43 = dma.hbm_to_vmem [thread:$0]  %s38, 128, %s41, [#allocation6]
    $region9: #{tpu_custom_call.1} parent=1 // pred_fallthru
      _
    // Predicated region
    $region10: #{tpu_custom_call.1} parent=1 // pred_check
      _
    $region11: #{tpu_custom_call.1} parent=1 // pred_check_branch
      %45 = sbr.rel (0) target = $region13
    $region12: #{tpu_custom_call.1} parent=1 // pred_region
      %s46 = sadd.s32 0, 0
      %p47 = scmp.lt.s32.totalorder %s46, 0
      %s48 = scalar_select %p47, %s46, 0
      %s49 = smul.u32 4, %s48
      %s51 = ssub.s32 512, 512
      %52 = vsyncadd [#allocation6], %s51
      %s53 = smul.addr %s49, 128
      %s54 = scalar_lea.hbm %s2, %s53
      %s55 = sshll.u32 [#allocation7], 4
      %s56 = int_to_ptr.vmem [resolvable:$true] %s55
      %61 = dma.hbm_to_vmem [thread:$0]  %s54, 512, %s56, [#allocation6], 128, 128, 8
    $region13: #{tpu_custom_call.1} parent=1 // pred_fallthru
      _
    // Predicated region
    $region14: #{tpu_custom_call.1} parent=1 // pred_check
      _
    $region15: #{tpu_custom_call.1} parent=1 // pred_check_branch
      %63 = sbr.rel (0) target = $region17
    $region16: #{tpu_custom_call.1} parent=1 // pred_region
      %64 = dma.done [#allocation3], 512
    $region17: #{tpu_custom_call.1} parent=1 // pred_fallthru
      _
    // Predicated region
    $region18: #{tpu_custom_call.1} parent=1 // pred_check
      _
    $region19: #{tpu_custom_call.1} parent=1 // pred_check_branch
      %66 = sbr.rel (0) target = $region21
    $region20: #{tpu_custom_call.1} parent=1 // pred_region
      %67 = dma.done [#allocation6], 128
    $region21: #{tpu_custom_call.1} parent=1 // pred_fallthru
      _
    // Predicated region
    $region22: #{tpu_custom_call.1} parent=1 // pred_check
      _
    $region23: #{tpu_custom_call.1} parent=1 // pred_check_branch
      %69 = sbr.rel (0) target = $region25
    $region24: #{tpu_custom_call.1} parent=1 // pred_region
      %70 = dma.done [#allocation6], 512
    $region25: #{tpu_custom_call.1} parent=1 // pred_fallthru
      _
    %s71 = sadd.s32 0, 0
    %p72 = scmp.lt.s32.totalorder %s71, 0
    %s73 = scalar_select %p72, %s71, 0
    %s74 = smul.u32 4, %s73
    %s75 = sadd.s32 0, 0
    %p76 = scmp.lt.s32.totalorder %s75, 0
    %s77 = scalar_select %p76, %s75, 0
    %s78 = sadd.s32 0, 0
    %p79 = scmp.lt.s32.totalorder %s78, 0
    %s80 = scalar_select %p79, %s78, 0
    %s81 = smul.u32 4, %s80
    %p82 = scmp.eq.s32.totalorder 0, 0
    // Predicated region
    $region26: #{tpu_custom_call.1} parent=1 // pred_check
      %p83 = pneg %p82
    $region27: #{tpu_custom_call.1} parent=1 // pred_check_branch
      %85 = sbr.rel (%p83) target = $region29
    $region28: #{tpu_custom_call.1} parent=1 // pred_region
      %86 = vst [vmem:[#allocation8] sm:$0xff] 0.0
    $region29: #{tpu_custom_call.1} parent=1 // pred_fallthru
      _
    %v87 = vld [vmem:[#allocation2] sm:$0xff]
    %v88 = vld [vmem:[#allocation2 + $0x8] sm:$0xff]
    %v89 = vld [vmem:[#allocation2 + $0x10] sm:$0xff]
    %v90 = vld [vmem:[#allocation2 + $0x18] sm:$0xff]
    %v91 = vmul.f32 %v87, 1.442695
    %v92 = vpow.pop %v91
    %v93 = vmul.f32 %v88, 1.442695
    %v94 = vpow.pop %v93
    %v95 = vmul.f32 %v89, 1.442695
    %v96 = vpow.pop %v95
    %v97 = vmul.f32 %v90, 1.442695
    %v98 = vpow.pop %v97
    %v99 = vsub.f32 1.0, %v92
    %v100 = vsub.f32 1.0, %v94
    %v101 = vsub.f32 1.0, %v96
    %v102 = vsub.f32 1.0, %v98
    %v103 = vmul.f32 %v99, %v99
    %v104 = vmul.f32 %v100, %v100
    %v105 = vmul.f32 %v101, %v101
    %v106 = vmul.f32 %v102, %v102
    %v107 = vmul.f32 %v103, %v99
    %v108 = vmul.f32 %v104, %v100
    %v109 = vmul.f32 %v105, %v101
    %v110 = vmul.f32 %v106, %v102
    %v111 = vld [vmem:[#allocation5] sm:$0xff]
    %v112 = vunpack.c.0.s8 %v111
    %v113 = vunpack.c.1.s8 %v111
    %v114 = vunpack.c.2.s8 %v111
    %v115 = vunpack.c.3.s8 %v111
    %v116 = vcvt.s32.f32 %v112
    %v117 = vcvt.s32.f32 %v113
    %v118 = vcvt.s32.f32 %v114
    %v119 = vcvt.s32.f32 %v115
    %v120 = vmul.f32 %v116, 0.5
    %v121 = vmul.f32 %v117, 0.5
    %v122 = vmul.f32 %v118, 0.5
    %v123 = vmul.f32 %v119, 0.5
    %v124 = vadd.f32 %v120, 0.25
    %v125 = vadd.f32 %v121, 0.25
    %v126 = vadd.f32 %v122, 0.25
    %v127 = vadd.f32 %v123, 0.25
    %v128 = vsub.f32 0.0, %v107
    %v129 = vsub.f32 0.0, %v108
    %v130 = vsub.f32 0.0, %v109
    %v131 = vsub.f32 0.0, %v110
    %v132 = vmul.f32 %v87, %v124
    %v133 = vmul.f32 %v88, %v125
    %v134 = vmul.f32 %v89, %v126
    %v135 = vmul.f32 %v90, %v127
    %v136 = vmul.f32 %v128, %v132
    %v137 = vmul.f32 %v129, %v133
    %v138 = vmul.f32 %v130, %v134
    %v139 = vmul.f32 %v131, %v135
    %v140 = vld [vmem:[#allocation7] sm:$0xff]
    %v141 = vld [vmem:[#allocation7 + $0x8] sm:$0xff]
    %v142 = vld [vmem:[#allocation7 + $0x10] sm:$0xff]
    %v143 = vld [vmem:[#allocation7 + $0x18] sm:$0xff]
    %v144 = vmul.f32 %v136, %v140
    %v145 = vmul.f32 %v137, %v141
    %v146 = vmul.f32 %v138, %v142
    %v147 = vmul.f32 %v139, %v143
    %s148 = sadd.s32 0, 0
    %s149 = smul.u32 %s148, 32
    %v150 = vlaneseq
    %v151 = vshrl.u32 %v150, 7
    %v152 = vadd.s32 %v151, 8
    %v153 = vadd.s32 %v151, 16
    %v154 = vadd.s32 %v151, 24
    %v155 = vstv %s149
    %v156 = vadd.s32 %v155, %v151
    %v157 = vadd.s32 %v155, %v152
    %v158 = vadd.s32 %v155, %v153
    %v159 = vadd.s32 %v155, %v154
    %vm160 = vcmp.lt.s32.totalorder %v156, 32
    %vm161 = vcmp.lt.s32.totalorder %v157, 32
    %vm162 = vcmp.lt.s32.totalorder %v158, 32
    %vm163 = vcmp.lt.s32.totalorder %v159, 32
    %v164 = vsel %vm160, %v144, 0.0
    %v165 = vsel %vm161, %v145, 0.0
    %v166 = vsel %vm162, %v146, 0.0
    %v167 = vsel %vm163, %v147, 0.0
    %v168 = vld [vmem:[#allocation8] sm:$0xff]
    %v169 = vadd.f32 %v164, %v165
    %v170 = vadd.f32 %v169, %v166
    %v171 = vadd.f32 %v170, %v167
    %v172 = vadd.f32 %v168, %v171
    %173 = vst [vmem:[#allocation8] sm:$0xff] %v172
    // Predicated region
    $region30: #{tpu_custom_call.1} parent=1 // pred_check
      _
    $region31: #{tpu_custom_call.1} parent=1 // pred_check_branch
      %175 = sbr.rel (0) target = $region33
    $region32: #{tpu_custom_call.1} parent=1 // pred_region
      %s177 = ssub.s32 128, 128
      %178 = vsyncadd [#allocation4], %s177
      %s180 = sshll.u32 [#allocation8], 4
      %s181 = int_to_ptr.vmem [resolvable:$true] %s180
      %183 = dma.vmem_to_hbm [thread:$0]  %s181, 128, %s3, [#allocation4]
    $region33: #{tpu_custom_call.1} parent=1 // pred_fallthru
      _
    // Predicated region
    $region34: #{tpu_custom_call.1} parent=1 // pred_check
      _
    $region35: #{tpu_custom_call.1} parent=1 // pred_check_branch
      %185 = sbr.rel (0) target = $region37
    $region36: #{tpu_custom_call.1} parent=1 // pred_region
      %186 = dma.done [#allocation4], 128
    $region37: #{tpu_custom_call.1} parent=1 // pred_fallthru
      _
    %187 = vsyncpa [#allocation3], 1
    %188 = vsyncpa [#allocation6], 1
    %189 = vsyncpa [#allocation4], 1

</llo_original>
